<compile_context>
chip_gen: v6e
topology: v6e:2x2x1
jax: 0.10.0
libtpu: 0.0.40
codegen_flags: <defaults>
</compile_context>

<pallas_src>
import math

import jax
import jax.numpy as jnp
from jax.experimental import pallas as pl

BATCH = 2
DIM = 64          # `dim` of downsample_block
LENGTH = 16       # sequence length L (must be even for the stride-2 pool)
LN_EPS = 1e-5     # nn.LayerNorm default eps


def _erf(x):
    # Abramowitz & Stegun 7.1.26 rational approximation, |error| < 1.5e-7.
    a1, a2, a3, a4, a5 = (0.254829592, -0.284496736, 1.421413741,
                          -1.453152027, 1.061405429)
    p = 0.3275911
    sign = jnp.where(x >= 0.0, 1.0, -1.0)
    ax = jnp.abs(x)
    t = 1.0 / (1.0 + p * ax)
    poly = ((((a5 * t + a4) * t + a3) * t + a2) * t + a1) * t
    return sign * (1.0 - poly * jnp.exp(-ax * ax))


def _gelu_exact(x):
    # matches torch.nn.functional.gelu (exact erf form) to ~1e-7
    return 0.5 * x * (1.0 + _erf(x * (1.0 / math.sqrt(2.0))))


def downsample_kernel(x_ref, w_ref, v_ref, out_ref):
    bl, c = x_ref.shape           # (B*L, dim)       channel-last tokens
    t, c2 = out_ref.shape         # (B*L//2, 2*dim)  pooled channel-last tokens

    x = x_ref[...]                                        # (BL, C)

    # --- LayerNorm over channels (affine, eps=1e-5) ---
    gamma = v_ref[0:1, 0:c]                               # (1, C)
    beta = v_ref[1:2, 0:c]                                # (1, C)
    mu = jnp.mean(x, axis=-1, keepdims=True)
    var = jnp.mean((x - mu) ** 2, axis=-1, keepdims=True)
    xn = (x - mu) * jax.lax.rsqrt(var + LN_EPS) * gamma + beta

    # --- Linear(dim -> 2*dim, bias=False) + exact GELU ---
    y = jnp.dot(xn, w_ref[0:c, :], preferred_element_type=jnp.float32)   # (BL, 2C)
    y = _gelu_exact(y)

    # --- Conv1d(2C, 2C, kernel=2, stride=2) as MXU matmuls ---
    # Even/odd token selectors: output token u consumes rows 2u and 2u+1 of
    # the flattened sequence (exact, since L is even).  Selector matmuls keep
    # the reduction on the MXU instead of strided sublane gathers / concats.
    rows = jax.lax.broadcasted_iota(jnp.int32, (t, bl), 0)
    cols = jax.lax.broadcasted_iota(jnp.int32, (t, bl), 1)
    s_even = jnp.where(cols == 2 * rows, 1.0, 0.0)        # (T, BL)
    s_odd = jnp.where(cols == 2 * rows + 1, 1.0, 0.0)     # (T, BL)
    y_even = jnp.dot(s_even, y, preferred_element_type=jnp.float32)      # (T, 2C)
    y_odd = jnp.dot(s_odd, y, preferred_element_type=jnp.float32)        # (T, 2C)

    w0t = w_ref[c:c + c2, :]              # conv tap k=0, transposed (2C, 2C)
    w1t = w_ref[c + c2:c + 2 * c2, :]     # conv tap k=1, transposed (2C, 2C)
    bias = v_ref[2:3, :]                  # (1, 2C)

    out_ref[...] = (jnp.dot(y_even, w0t, preferred_element_type=jnp.float32)
                    + jnp.dot(y_odd, w1t, preferred_element_type=jnp.float32)
                    + bias)


def init_params(key):
    c2 = 2 * DIM
    k1, k2, k3, k4, k5 = jax.random.split(key, 5)
    return {
        "ln_g": 1.0 + 0.1 * jax.random.normal(k1, (DIM,), jnp.float32),
        "ln_b": 0.1 * jax.random.normal(k2, (DIM,), jnp.float32),
        "proj_w": 0.05 * jax.random.normal(k3, (c2, DIM), jnp.float32),    # Linear (out, in)
        "pool_w": 0.05 * jax.random.normal(k4, (c2, c2, 2), jnp.float32),  # Conv1d (out, in, k)
        "pool_b": 0.05 * jax.random.normal(k5, (c2,), jnp.float32),
    }


def pack_params(params):
    """Pack the five weight tensors into two lane-dense slabs (done once)."""
    c = DIM
    w_slab = jnp.concatenate(
        [params["proj_w"].T,              # rows [0:C)       y = xn @ proj_w.T
         params["pool_w"][:, :, 0].T,     # rows [C:C+2C)    conv tap k=0 (transposed)
         params["pool_w"][:, :, 1].T],    # rows [C+2C:C+4C) conv tap k=1 (transposed)
        axis=0)                            # (5C, 2C)
    zeros = jnp.zeros((1, c), jnp.float32)
    v_slab = jnp.concatenate(
        [jnp.concatenate([params["ln_g"][None, :], zeros], axis=1),  # row 0: gamma | 0
         jnp.concatenate([params["ln_b"][None, :], zeros], axis=1),  # row 1: beta  | 0
         params["pool_b"][None, :]],                                 # row 2: conv bias
        axis=0)                            # (3, 2C)
    return w_slab, v_slab


def downsample_forward(x, w_slab, v_slab):
    """x: (B, dim, L) channel-first, like the PyTorch module."""
    b, c, l = x.shape
    c2 = 2 * c
    t = l // 2
    # channel_last() + flatten batch*seq (pure layout glue, fused in the jit)
    x_cl = jnp.transpose(x, (0, 2, 1)).reshape(b * l, c)
    out_cl = pl.pallas_call(
        downsample_kernel,
        out_shape=jax.ShapeDtypeStruct((b * t, c2), jnp.float32),
    )(x_cl, w_slab, v_slab)
    # back to the module's (B, 2*dim, L/2) channel-first layout
    return jnp.transpose(out_cl.reshape(b, t, c2), (0, 2, 1))


def reference_forward(params, x):
    """Pure-JAX reference with identical semantics to the PyTorch module."""
    xc = jnp.transpose(x, (0, 2, 1))                                  # (B, L, C)
    mu = jnp.mean(xc, axis=-1, keepdims=True)
    var = jnp.mean((xc - mu) ** 2, axis=-1, keepdims=True)
    xn = (xc - mu) / jnp.sqrt(var + LN_EPS) * params["ln_g"] + params["ln_b"]
    y = xn @ params["proj_w"].T                                       # (B, L, 2C)
    y = 0.5 * y * (1.0 + jax.lax.erf(y / jnp.sqrt(2.0)))              # exact GELU
    y = jnp.transpose(y, (0, 2, 1))                                   # (B, 2C, L)
    w0 = params["pool_w"][:, :, 0]
    w1 = params["pool_w"][:, :, 1]
    out = (jnp.einsum("oc,bcl->bol", w0, y[:, :, 0::2])
           + jnp.einsum("oc,bcl->bol", w1, y[:, :, 1::2])
           + params["pool_b"][None, :, None])                         # (B, 2C, L/2)
    return out


if __name__ == "__main__":
    key = jax.random.PRNGKey(0)
    k_params, k_x = jax.random.split(key)
    params = init_params(k_params)
    x = jax.random.normal(k_x, (BATCH, DIM, LENGTH), dtype=jnp.float32)

    w_slab, v_slab = pack_params(params)

    fwd = jax.jit(downsample_forward)
    out = jax.block_until_ready(fwd(x, w_slab, v_slab))

    assert out.shape == (BATCH, 2 * DIM, LENGTH // 2)
    assert bool(jnp.all(jnp.isfinite(out)))

    ref = reference_forward(params, x)
    max_err = float(jnp.max(jnp.abs(out - ref)))
    assert bool(jnp.allclose(out, ref, atol=2e-4, rtol=2e-4)), max_err

    print("KERNEL_OK")
</pallas_src>

<mosaic_0001>
module attributes {stable_mosaic.version = 11 : i64} {
  func.func @downsample_kernel(%arg0: memref<32x64xf32, #tpu.memory_space<vmem>>, %arg1: memref<320x128xf32, #tpu.memory_space<vmem>>, %arg2: memref<3x128xf32, #tpu.memory_space<vmem>>, %arg3: memref<16x128xf32, #tpu.memory_space<vmem>>) attributes {dimension_semantics = [], scalar_prefetch = 0 : i64, scratch_operands = 0 : i64, tpu.core_type = #tpu.core_type<tc>} {
    %c0 = arith.constant 0 : index
    %c0_0 = arith.constant 0 : index
    %0 = vector.load %arg0[%c0, %c0_0] : memref<32x64xf32, #tpu.memory_space<vmem>>, vector<32x64xf32>
    %c0_1 = arith.constant 0 : index
    %c0_2 = arith.constant 0 : index
    %1 = vector.load %arg2[%c0_1, %c0_2] : memref<3x128xf32, #tpu.memory_space<vmem>>, vector<1x64xf32>
    %c1 = arith.constant 1 : index
    %c0_3 = arith.constant 0 : index
    %2 = vector.load %arg2[%c1, %c0_3] : memref<3x128xf32, #tpu.memory_space<vmem>>, vector<1x64xf32>
    %cst = arith.constant dense<0.000000e+00> : vector<32xf32>
    %3 = vector.multi_reduction <add>, %0, %cst [1] : vector<32x64xf32> to vector<32xf32>
    %4 = vector.shape_cast %3 : vector<32xf32> to vector<32x1xf32>
    %cst_4 = arith.constant 6.400000e+01 : f32
    %5 = vector.broadcast %cst_4 : f32 to vector<32x1xf32>
    %6 = arith.divf %4, %5 : vector<32x1xf32>
    %7 = vector.broadcast %6 : vector<32x1xf32> to vector<32x64xf32>
    %8 = arith.subf %0, %7 : vector<32x64xf32>
    %9 = arith.mulf %8, %8 : vector<32x64xf32>
    %cst_5 = arith.constant dense<0.000000e+00> : vector<32xf32>
    %10 = vector.multi_reduction <add>, %9, %cst_5 [1] : vector<32x64xf32> to vector<32xf32>
    %11 = vector.shape_cast %10 : vector<32xf32> to vector<32x1xf32>
    %cst_6 = arith.constant 6.400000e+01 : f32
    %12 = vector.broadcast %cst_6 : f32 to vector<32x1xf32>
    %13 = arith.divf %11, %12 : vector<32x1xf32>
    %14 = vector.broadcast %6 : vector<32x1xf32> to vector<32x64xf32>
    %15 = arith.subf %0, %14 : vector<32x64xf32>
    %cst_7 = arith.constant 9.99999974E-6 : f32
    %16 = vector.broadcast %cst_7 : f32 to vector<32x1xf32>
    %17 = arith.addf %13, %16 : vector<32x1xf32>
    %18 = math.rsqrt %17 : vector<32x1xf32>
    %19 = vector.broadcast %18 : vector<32x1xf32> to vector<32x64xf32>
    %20 = arith.mulf %15, %19 : vector<32x64xf32>
    %21 = vector.broadcast %1 : vector<1x64xf32> to vector<32x64xf32>
    %22 = arith.mulf %20, %21 : vector<32x64xf32>
    %23 = vector.broadcast %2 : vector<1x64xf32> to vector<32x64xf32>
    %24 = arith.addf %22, %23 : vector<32x64xf32>
    %c0_8 = arith.constant 0 : index
    %c0_9 = arith.constant 0 : index
    %25 = vector.load %arg1[%c0_8, %c0_9] : memref<320x128xf32, #tpu.memory_space<vmem>>, vector<64x128xf32>
    %cst_10 = arith.constant dense<0.000000e+00> : vector<32x128xf32>
    %26 = tpu.matmul %24, %25, %cst_10 {dimension_numbers = #tpu.dot_dimension_numbers<[1], [0], [0], [1], [0, 0, 1, 1], [], []>} : vector<32x64xf32>, vector<64x128xf32>, vector<32x128xf32> -> vector<32x128xf32>
    %cst_11 = arith.constant 5.000000e-01 : f32
    %27 = vector.broadcast %cst_11 : f32 to vector<32x128xf32>
    %28 = arith.mulf %27, %26 : vector<32x128xf32>
    %cst_12 = arith.constant 0.707106769 : f32
    %29 = vector.broadcast %cst_12 : f32 to vector<32x128xf32>
    %30 = arith.mulf %26, %29 : vector<32x128xf32>
    %cst_13 = arith.constant 0.000000e+00 : f32
    %31 = vector.broadcast %cst_13 : f32 to vector<32x128xf32>
    %32 = arith.cmpf oge, %30, %31 : vector<32x128xf32>
    %cst_14 = arith.constant 1.000000e+00 : f32
    %cst_15 = arith.constant -1.000000e+00 : f32
    %33 = vector.broadcast %cst_14 : f32 to vector<32x128xf32>
    %34 = vector.broadcast %cst_15 : f32 to vector<32x128xf32>
    %35 = arith.select %32, %33, %34 : vector<32x128xi1>, vector<32x128xf32>
    %36 = math.absf %30 : vector<32x128xf32>
    %cst_16 = arith.constant 0.327591091 : f32
    %37 = vector.broadcast %cst_16 : f32 to vector<32x128xf32>
    %38 = arith.mulf %37, %36 : vector<32x128xf32>
    %cst_17 = arith.constant 1.000000e+00 : f32
    %39 = vector.broadcast %cst_17 : f32 to vector<32x128xf32>
    %40 = arith.addf %39, %38 : vector<32x128xf32>
    %cst_18 = arith.constant 1.000000e+00 : f32
    %41 = vector.broadcast %cst_18 : f32 to vector<32x128xf32>
    %42 = arith.divf %41, %40 : vector<32x128xf32>
    %cst_19 = arith.constant 1.06140542 : f32
    %43 = vector.broadcast %cst_19 : f32 to vector<32x128xf32>
    %44 = arith.mulf %43, %42 : vector<32x128xf32>
    %cst_20 = arith.constant -1.45315206 : f32
    %45 = vector.broadcast %cst_20 : f32 to vector<32x128xf32>
    %46 = arith.addf %44, %45 : vector<32x128xf32>
    %47 = arith.mulf %46, %42 : vector<32x128xf32>
    %cst_21 = arith.constant 1.42141378 : f32
    %48 = vector.broadcast %cst_21 : f32 to vector<32x128xf32>
    %49 = arith.addf %47, %48 : vector<32x128xf32>
    %50 = arith.mulf %49, %42 : vector<32x128xf32>
    %cst_22 = arith.constant -0.284496725 : f32
    %51 = vector.broadcast %cst_22 : f32 to vector<32x128xf32>
    %52 = arith.addf %50, %51 : vector<32x128xf32>
    %53 = arith.mulf %52, %42 : vector<32x128xf32>
    %cst_23 = arith.constant 0.254829586 : f32
    %54 = vector.broadcast %cst_23 : f32 to vector<32x128xf32>
    %55 = arith.addf %53, %54 : vector<32x128xf32>
    %56 = arith.mulf %55, %42 : vector<32x128xf32>
    %cst_24 = arith.constant 0.000000e+00 : f32
    %57 = vector.broadcast %cst_24 : f32 to vector<32x128xf32>
    %58 = arith.subf %57, %36 : vector<32x128xf32>
    %59 = arith.mulf %58, %36 : vector<32x128xf32>
    %60 = math.exp %59 : vector<32x128xf32>
    %61 = arith.mulf %56, %60 : vector<32x128xf32>
    %cst_25 = arith.constant 1.000000e+00 : f32
    %62 = vector.broadcast %cst_25 : f32 to vector<32x128xf32>
    %63 = arith.subf %62, %61 : vector<32x128xf32>
    %64 = arith.mulf %35, %63 : vector<32x128xf32>
    %cst_26 = arith.constant 1.000000e+00 : f32
    %65 = vector.broadcast %cst_26 : f32 to vector<32x128xf32>
    %66 = arith.addf %65, %64 : vector<32x128xf32>
    %67 = arith.mulf %28, %66 : vector<32x128xf32>
    %68 = tpu.iota {dimensions = array<i32: 0>} : vector<16x32xi32>
    %69 = tpu.iota {dimensions = array<i32: 1>} : vector<16x32xi32>
    %c2_i32 = arith.constant 2 : i32
    %70 = vector.broadcast %c2_i32 : i32 to vector<16x32xi32>
    %71 = arith.muli %70, %68 : vector<16x32xi32>
    %72 = arith.cmpi eq, %69, %71 : vector<16x32xi32>
    %cst_27 = arith.constant 1.000000e+00 : f32
    %cst_28 = arith.constant 0.000000e+00 : f32
    %73 = vector.broadcast %cst_27 : f32 to vector<16x32xf32>
    %74 = vector.broadcast %cst_28 : f32 to vector<16x32xf32>
    %75 = arith.select %72, %73, %74 : vector<16x32xi1>, vector<16x32xf32>
    %c2_i32_29 = arith.constant 2 : i32
    %76 = vector.broadcast %c2_i32_29 : i32 to vector<16x32xi32>
    %77 = arith.muli %76, %68 : vector<16x32xi32>
    %c1_i32 = arith.constant 1 : i32
    %78 = vector.broadcast %c1_i32 : i32 to vector<16x32xi32>
    %79 = arith.addi %77, %78 : vector<16x32xi32>
    %80 = arith.cmpi eq, %69, %79 : vector<16x32xi32>
    %cst_30 = arith.constant 1.000000e+00 : f32
    %cst_31 = arith.constant 0.000000e+00 : f32
    %81 = vector.broadcast %cst_30 : f32 to vector<16x32xf32>
    %82 = vector.broadcast %cst_31 : f32 to vector<16x32xf32>
    %83 = arith.select %80, %81, %82 : vector<16x32xi1>, vector<16x32xf32>
    %cst_32 = arith.constant dense<0.000000e+00> : vector<16x128xf32>
    %84 = tpu.matmul %75, %67, %cst_32 {dimension_numbers = #tpu.dot_dimension_numbers<[1], [0], [0], [1], [0, 0, 1, 1], [], []>} : vector<16x32xf32>, vector<32x128xf32>, vector<16x128xf32> -> vector<16x128xf32>
    %cst_33 = arith.constant dense<0.000000e+00> : vector<16x128xf32>
    %85 = tpu.matmul %83, %67, %cst_33 {dimension_numbers = #tpu.dot_dimension_numbers<[1], [0], [0], [1], [0, 0, 1, 1], [], []>} : vector<16x32xf32>, vector<32x128xf32>, vector<16x128xf32> -> vector<16x128xf32>
    %c64 = arith.constant 64 : index
    %c0_34 = arith.constant 0 : index
    %86 = vector.load %arg1[%c64, %c0_34] : memref<320x128xf32, #tpu.memory_space<vmem>>, vector<128x128xf32>
    %c192 = arith.constant 192 : index
    %c0_35 = arith.constant 0 : index
    %87 = vector.load %arg1[%c192, %c0_35] : memref<320x128xf32, #tpu.memory_space<vmem>>, vector<128x128xf32>
    %c2 = arith.constant 2 : index
    %c0_36 = arith.constant 0 : index
    %88 = vector.load %arg2[%c2, %c0_36] : memref<3x128xf32, #tpu.memory_space<vmem>>, vector<1x128xf32>
    %cst_37 = arith.constant dense<0.000000e+00> : vector<16x128xf32>
    %89 = tpu.matmul %84, %86, %cst_37 {dimension_numbers = #tpu.dot_dimension_numbers<[1], [0], [0], [1], [0, 0, 1, 1], [], []>} : vector<16x128xf32>, vector<128x128xf32>, vector<16x128xf32> -> vector<16x128xf32>
    %cst_38 = arith.constant dense<0.000000e+00> : vector<16x128xf32>
    %90 = tpu.matmul %85, %87, %cst_38 {dimension_numbers = #tpu.dot_dimension_numbers<[1], [0], [0], [1], [0, 0, 1, 1], [], []>} : vector<16x128xf32>, vector<128x128xf32>, vector<16x128xf32> -> vector<16x128xf32>
    %91 = arith.addf %89, %90 : vector<16x128xf32>
    %92 = vector.broadcast %88 : vector<1x128xf32> to vector<16x128xf32>
    %93 = arith.addf %91, %92 : vector<16x128xf32>
    %c0_39 = arith.constant 0 : index
    %c0_40 = arith.constant 0 : index
    %94 = vector.load %arg3[%c0_39, %c0_40] : memref<16x128xf32, #tpu.memory_space<vmem>>, vector<16x128xf32>
    tpu.vector_store %arg3[%c0_39, %c0_40], %93 {strides = array<i32>} : memref<16x128xf32, #tpu.memory_space<vmem>>, vector<16x128xf32>,
    return
  }
}

</mosaic_0001>

<llo_original>
// kernel: downsample_forward.1
$region0: #{downsample_forward.1}
  #allocation0 [shape = 'u32[]', space=smem, size = 0x4, offset = 0x4, fixed_abs, tag = 'smem constant byte address 0x4 - core index']
  #allocation1 [shape = 'u32[144,128]{1,0:T(1,128)}', space=vmem, size = 0x12000, scoped, tag = 'internal scratch']
  %s0 = inlined_call_operand.hbm [shape: f32[32,64], index: 0, kind: input, shape index: {}]
  %s1 = inlined_call_operand.hbm [shape: f32[320,128], index: 1, kind: input, shape index: {}]
  %s2 = inlined_call_operand.vmem [shape: f32[3,128], index: 2, kind: input, shape index: {}]
  %s3 = inlined_call_operand.hbm [shape: f32[16,128], index: 3, kind: output, shape index: {}]
  %s4 = sld [smem:[#allocation0]]
  $region30: #{downsample_forward.1} parent=0
    _
  %s6 = ssub.s32 1, %s4
  %s7 = scalar_select 0, %s6, %s4
  $region1: #{downsample_forward.1} parent=0
    #allocation2 [shape = 'u8[16384]{0}', space=vmem, size = 0x4000, scoped, tag = 'input window, operand 0, single buffered']
    #allocation3 [shape = 's32[1]{0}', space=sflag, size = 0x4, scoped, tag = 'scoped memory for downsample_forward.1']
    #allocation4 [shape = 's32[1]{0}', space=sflag, size = 0x4, scoped, tag = 'scoped memory for downsample_forward.1']
    #allocation5 [shape = 'u8[163840]{0}', space=vmem, size = 0x28000, scoped, tag = 'input window, operand 1, single buffered']
    #allocation6 [shape = 's32[1]{0}', space=sflag, size = 0x4, scoped, tag = 'scoped memory for downsample_forward.1']
    #allocation7 [shape = 'u8[8192]{0}', space=vmem, size = 0x2000, scoped, tag = 'output window, operand 0, single buffered']
    %8 = vsyncpa [#allocation3], 0
    %9 = vsyncpa [#allocation6], 0
    %10 = vsyncpa [#allocation4], 0
    // Predicated region
    $region2: #{downsample_forward.1} parent=1 // pred_check
      _
    $region3: #{downsample_forward.1} parent=1 // pred_check_branch
      %12 = sbr.rel (0) target = $region5
    $region4: #{downsample_forward.1} parent=1 // pred_region
      %s14 = ssub.s32 512, 512
      %15 = vsyncadd [#allocation3], %s14
      %s16 = sshll.u32 [#allocation2], 4
      %s17 = int_to_ptr.vmem [resolvable:$true] %s16
      %22 = dma.hbm_to_vmem [thread:$0]  %s0, 512, %s17, [#allocation3], 128, 128, 8
    $region5: #{downsample_forward.1} parent=1 // pred_fallthru
      _
    // Predicated region
    $region6: #{downsample_forward.1} parent=1 // pred_check
      _
    $region7: #{downsample_forward.1} parent=1 // pred_check_branch
      %24 = sbr.rel (0) target = $region9
    $region8: #{downsample_forward.1} parent=1 // pred_region
      %s26 = ssub.s32 5120, 5120
      %27 = vsyncadd [#allocation6], %s26
      %s28 = sshll.u32 [#allocation5], 4
      %s29 = int_to_ptr.vmem [resolvable:$true] %s28
      %34 = dma.hbm_to_vmem [thread:$0]  %s1, 5120, %s29, [#allocation6], 128, 128, 8
    $region9: #{downsample_forward.1} parent=1 // pred_fallthru
      _
    // Predicated region
    $region10: #{downsample_forward.1} parent=1 // pred_check
      _
    $region11: #{downsample_forward.1} parent=1 // pred_check_branch
      %36 = sbr.rel (0) target = $region13
    $region12: #{downsample_forward.1} parent=1 // pred_region
      _
    $region13: #{downsample_forward.1} parent=1 // pred_fallthru
      _
    // Predicated region
    $region14: #{downsample_forward.1} parent=1 // pred_check
      _
    $region15: #{downsample_forward.1} parent=1 // pred_check_branch
      %38 = sbr.rel (0) target = $region17
    $region16: #{downsample_forward.1} parent=1 // pred_region
      %39 = dma.done [#allocation3], 512
    $region17: #{downsample_forward.1} parent=1 // pred_fallthru
      _
    // Predicated region
    $region18: #{downsample_forward.1} parent=1 // pred_check
      _
    $region19: #{downsample_forward.1} parent=1 // pred_check_branch
      %41 = sbr.rel (0) target = $region21
    $region20: #{downsample_forward.1} parent=1 // pred_region
      %42 = dma.done [#allocation6], 5120
    $region21: #{downsample_forward.1} parent=1 // pred_fallthru
      _
    %v43 = vld [vmem:[#allocation2] sm:$0xff]
    %v44 = vld [vmem:[#allocation2 + $0x8] sm:$0xff]
    %v45 = vld [vmem:[#allocation2 + $0x10] sm:$0xff]
    %v46 = vld [vmem:[#allocation2 + $0x18] sm:$0xff]
    %v47 = vld [vmem:[%s2] sm:$0x1]
    %v48 = vld [vmem:[%s2 + $0x1] sm:$0x1]
    %vm49 = vcmask 523264
    %v50 = vsel %vm49, %v43, 0.0
    %51 = vadd.xlane.f32.xlu0 %v50
    %v52 = vpop.xlane.xlu0 %51
    %v53 = vsel %vm49, %v44, 0.0
    %54 = vadd.xlane.f32.xlu0 %v53
    %v55 = vpop.xlane.xlu0 %54
    %v56 = vsel %vm49, %v45, 0.0
    %57 = vadd.xlane.f32.xlu0 %v56
    %v58 = vpop.xlane.xlu0 %57
    %v59 = vsel %vm49, %v46, 0.0
    %60 = vadd.xlane.f32.xlu0 %v59
    %v61 = vpop.xlane.xlu0 %60
    %v62 = vrcp.pop 64.0
    %v63 = vmul.f32 %v52, %v62
    %v64 = vmul.f32 %v55, %v62
    %v65 = vmul.f32 %v58, %v62
    %v66 = vmul.f32 %v61, %v62
    %v67 = vsub.f32 %v43, %v63
    %v68 = vsub.f32 %v44, %v64
    %v69 = vsub.f32 %v45, %v65
    %v70 = vsub.f32 %v46, %v66
    %v71 = vmul.f32 %v67, %v67
    %v72 = vmul.f32 %v68, %v68
    %v73 = vmul.f32 %v69, %v69
    %v74 = vmul.f32 %v70, %v70
    %v75 = vsel %vm49, %v71, 0.0
    %76 = vadd.xlane.f32.xlu0 %v75
    %v77 = vpop.xlane.xlu0 %76
    %v78 = vsel %vm49, %v72, 0.0
    %79 = vadd.xlane.f32.xlu0 %v78
    %v80 = vpop.xlane.xlu0 %79
    %v81 = vsel %vm49, %v73, 0.0
    %82 = vadd.xlane.f32.xlu0 %v81
    %v83 = vpop.xlane.xlu0 %82
    %v84 = vsel %vm49, %v74, 0.0
    %85 = vadd.xlane.f32.xlu0 %v84
    %v86 = vpop.xlane.xlu0 %85
    %v87 = vmul.f32 %v77, %v62
    %v88 = vmul.f32 %v80, %v62
    %v89 = vmul.f32 %v83, %v62
    %v90 = vmul.f32 %v86, %v62
    %v91 = vadd.f32 %v87, 1e-05
    %v92 = vadd.f32 %v88, 1e-05
    %v93 = vadd.f32 %v89, 1e-05
    %v94 = vadd.f32 %v90, 1e-05
    %v95 = vrsqrt.pop %v91
    %v96 = vrsqrt.pop %v92
    %v97 = vrsqrt.pop %v93
    %v98 = vrsqrt.pop %v94
    %v99 = vmul.f32 %v67, %v95
    %v100 = vmul.f32 %v68, %v96
    %v101 = vmul.f32 %v69, %v97
    %v102 = vmul.f32 %v70, %v98
    %v103 = vlaneseq
    %v104 = vshrl.u32 %v103, 7
    %v105 = vsub.s32 0, %v104
    %v106 = vrot.slane %v47, %v105
    %v107 = vmul.f32 %v99, %v106
    %v108 = vmul.f32 %v100, %v106
    %v109 = vmul.f32 %v101, %v106
    %v110 = vmul.f32 %v102, %v106
    %v111 = vlaneseq
    %v112 = vshrl.u32 %v111, 7
    %v113 = vsub.s32 0, %v112
    %v114 = vrot.slane %v48, %v113
    %v115 = vadd.f32 %v107, %v114
    %v116 = vadd.f32 %v108, %v114
    %v117 = vadd.f32 %v109, %v114
    %v118 = vadd.f32 %v110, %v114
    %v119 = vld [vmem:[#allocation5] sm:$0xff]
    %v120 = vld [vmem:[#allocation5 + $0x8] sm:$0xff]
    %v121 = vld [vmem:[#allocation5 + $0x10] sm:$0xff]
    %v122 = vld [vmem:[#allocation5 + $0x18] sm:$0xff]
    %v123 = vld [vmem:[#allocation5 + $0x20] sm:$0xff]
    %v124 = vld [vmem:[#allocation5 + $0x28] sm:$0xff]
    %v125 = vld [vmem:[#allocation5 + $0x30] sm:$0xff]
    %v126 = vld [vmem:[#allocation5 + $0x38] sm:$0xff]
    %v128 = vsel %vm49, %v115, 0
    %v131 = vsel %vm49, %v116, 0
    %v134 = vsel %vm49, %v117, 0
    %v137 = vsel %vm49, %v118, 0
    %139 = vmatprep.subr.mxu0 0.0
    %140 = vmatpush1.msra.mxu0 0.0
    %141 = vmatprep.subr.mxu0 0.0
    %142 = vmatpush1.msra.mxu0 0.0
    %143 = vmatprep.subr.mxu0 0.0
    %144 = vmatpush1.msra.mxu0 0.0
    %145 = vmatprep.subr.mxu0 0.0
    %146 = vmatpush1.msra.mxu0 0.0
    %147 = vmatprep.subr.mxu0 0.0
    %148 = vmatpush1.msra.mxu0 0.0
    %149 = vmatprep.subr.mxu0 0.0
    %150 = vmatpush1.msra.mxu0 0.0
    %151 = vmatprep.subr.mxu0 0.0
    %152 = vmatpush1.msra.mxu0 0.0
    %153 = vmatprep.subr.mxu0 0.0
    %154 = vmatpush1.msra.mxu0 0.0
    %155 = vmatprep.subr.mxu0 0.0
    %156 = vmatpush1.msra.mxu0 %v126
    %157 = vmatprep.subr.mxu0 0.0
    %158 = vmatpush1.msra.mxu0 %v125
    %159 = vmatprep.subr.mxu0 0.0
    %160 = vmatpush1.msra.mxu0 %v124
    %161 = vmatprep.subr.mxu0 0.0
    %162 = vmatpush1.msra.mxu0 %v123
    %163 = vmatprep.subr.mxu0 0.0
    %164 = vmatpush1.msra.mxu0 %v122
    %165 = vmatprep.subr.mxu0 0.0
    %166 = vmatpush1.msra.mxu0 %v121
    %167 = vmatprep.subr.mxu0 0.0
    %168 = vmatpush1.msra.mxu0 %v120
    %169 = vmatprep.subr.mxu0 0.0
    %170 = vmatpush1.msra.mxu0 %v119
    %171 = vmatprep.subr.mxu0 0.0
    %172 = vmatpush2.msra.mxu0 0.0
    %173 = vmatprep.subr.mxu0 0.0
    %174 = vmatpush2.msra.mxu0 0.0
    %175 = vmatprep.subr.mxu0 0.0
    %176 = vmatpush2.msra.mxu0 0.0
    %177 = vmatprep.subr.mxu0 0.0
    %178 = vmatpush2.msra.mxu0 0.0
    %179 = vmatprep.subr.mxu0 0.0
    %180 = vmatpush2.msra.mxu0 0.0
    %181 = vmatprep.subr.mxu0 0.0
    %182 = vmatpush2.msra.mxu0 0.0
    %183 = vmatprep.subr.mxu0 0.0
    %184 = vmatpush2.msra.mxu0 0.0
    %185 = vmatprep.subr.mxu0 0.0
    %186 = vmatpush2.msra.mxu0 0.0
    %187 = vmatprep.subr.mxu0 0.0
    %188 = vmatpush2.msra.mxu0 0.0
    %189 = vmatprep.subr.mxu0 0.0
    %190 = vmatpush2.msra.mxu0 0.0
    %191 = vmatprep.subr.mxu0 0.0
    %192 = vmatpush2.msra.mxu0 0.0
    %193 = vmatprep.subr.mxu0 0.0
    %194 = vmatpush2.msra.mxu0 0.0
    %195 = vmatprep.subr.mxu0 0.0
    %196 = vmatpush2.msra.mxu0 0.0
    %197 = vmatprep.subr.mxu0 0.0
    %198 = vmatpush2.msra.mxu0 0.0
    %199 = vmatprep.subr.mxu0 0.0
    %200 = vmatpush2.msra.mxu0 0.0
    %201 = vmatprep.subr.mxu0 0.0
    %202 = vmatpush2.msra.mxu0 0.0
    %203 = vmatprep.mubr.f32.mxu0 0.0
    %204 = vmatmul.mubr.f32.gmra.mxu0 %v128
    %v205 = vpop.f32.mrf.mxu0
    %v206 = vadd.f32 0.0, %v205
    %v207 = vpop.f32.mrf.mxu0
    %208 = vmatprep.mubr.f32.mxu0 0.0
    %209 = vmatmul.mubr.f32.gmra.mxu0 %v131
    %v210 = vpop.f32.mrf.mxu0
    %v211 = vadd.f32 0.0, %v210
    %v212 = vpop.f32.mrf.mxu0
    %213 = vmatprep.mubr.f32.mxu0 0.0
    %214 = vmatmul.mubr.f32.gmra.mxu0 %v134
    %v215 = vpop.f32.mrf.mxu0
    %v216 = vadd.f32 0.0, %v215
    %v217 = vpop.f32.mrf.mxu0
    %218 = vmatprep.mubr.f32.mxu0 0.0
    %219 = vmatmul.mubr.f32.gmra.mxu0 %v137
    %v220 = vpop.f32.mrf.mxu0
    %v221 = vadd.f32 0.0, %v220
    %v222 = vpop.f32.mrf.mxu0
    %223 = vdwg.mxu0
    %v224 = vmul.f32 %v206, 0.5
    %v225 = vmul.f32 %v211, 0.5
    %v226 = vmul.f32 %v216, 0.5
    %v227 = vmul.f32 %v221, 0.5
    %v228 = vmul.f32 %v206, 0.70710677
    %v229 = vmul.f32 %v211, 0.70710677
    %v230 = vmul.f32 %v216, 0.70710677
    %v231 = vmul.f32 %v221, 0.70710677
    %vm232 = vcmp.ge.f32.partialorder %v228, 0.0
    %vm233 = vcmp.ge.f32.partialorder %v229, 0.0
    %vm234 = vcmp.ge.f32.partialorder %v230, 0.0
    %vm235 = vcmp.ge.f32.partialorder %v231, 0.0
    %v236 = vsel %vm232, 1.0, -1.0
    %v237 = vsel %vm233, 1.0, -1.0
    %v238 = vsel %vm234, 1.0, -1.0
    %v239 = vsel %vm235, 1.0, -1.0
    %v240 = vand.u32 2147483647, %v228
    %v241 = vand.u32 2147483647, %v229
    %v242 = vand.u32 2147483647, %v230
    %v243 = vand.u32 2147483647, %v231
    %v244 = vmul.f32 %v240, 0.3275911
    %v245 = vmul.f32 %v241, 0.3275911
    %v246 = vmul.f32 %v242, 0.3275911
    %v247 = vmul.f32 %v243, 0.3275911
    %v248 = vadd.f32 %v244, 1.0
    %v249 = vadd.f32 %v245, 1.0
    %v250 = vadd.f32 %v246, 1.0
    %v251 = vadd.f32 %v247, 1.0
    %v252 = vrcp.pop %v248
    %v253 = vmul.f32 1.0, %v252
    %v254 = vrcp.pop %v249
    %v255 = vmul.f32 1.0, %v254
    %v256 = vrcp.pop %v250
    %v257 = vmul.f32 1.0, %v256
    %v258 = vrcp.pop %v251
    %v259 = vmul.f32 1.0, %v258
    %v260 = vmul.f32 %v253, 1.0614054
    %v261 = vmul.f32 %v255, 1.0614054
    %v262 = vmul.f32 %v257, 1.0614054
    %v263 = vmul.f32 %v259, 1.0614054
    %v264 = vadd.f32 %v260, -1.4531521
    %v265 = vadd.f32 %v261, -1.4531521
    %v266 = vadd.f32 %v262, -1.4531521
    %v267 = vadd.f32 %v263, -1.4531521
    %v268 = vmul.f32 %v264, %v253
    %v269 = vmul.f32 %v265, %v255
    %v270 = vmul.f32 %v266, %v257
    %v271 = vmul.f32 %v267, %v259
    %v272 = vadd.f32 %v268, 1.4214138
    %v273 = vadd.f32 %v269, 1.4214138
    %v274 = vadd.f32 %v270, 1.4214138
    %v275 = vadd.f32 %v271, 1.4214138
    %v276 = vmul.f32 %v272, %v253
    %v277 = vmul.f32 %v273, %v255
    %v278 = vmul.f32 %v274, %v257
    %v279 = vmul.f32 %v275, %v259
    %v280 = vadd.f32 %v276, -0.28449672
    %v281 = vadd.f32 %v277, -0.28449672
    %v282 = vadd.f32 %v278, -0.28449672
    %v283 = vadd.f32 %v279, -0.28449672
    %v284 = vmul.f32 %v280, %v253
    %v285 = vmul.f32 %v281, %v255
    %v286 = vmul.f32 %v282, %v257
    %v287 = vmul.f32 %v283, %v259
    %v288 = vadd.f32 %v284, 0.2548296
    %v289 = vadd.f32 %v285, 0.2548296
    %v290 = vadd.f32 %v286, 0.2548296
    %v291 = vadd.f32 %v287, 0.2548296
    %v292 = vmul.f32 %v288, %v253
    %v293 = vmul.f32 %v289, %v255
    %v294 = vmul.f32 %v290, %v257
    %v295 = vmul.f32 %v291, %v259
    %v296 = vsub.f32 0.0, %v240
    %v297 = vsub.f32 0.0, %v241
    %v298 = vsub.f32 0.0, %v242
    %v299 = vsub.f32 0.0, %v243
    %v300 = vmul.f32 %v296, %v240
    %v301 = vmul.f32 %v297, %v241
    %v302 = vmul.f32 %v298, %v242
    %v303 = vmul.f32 %v299, %v243
    %v304 = vmul.f32 %v300, 1.442695
    %v305 = vpow.pop %v304
    %v306 = vmul.f32 %v301, 1.442695
    %v307 = vpow.pop %v306
    %v308 = vmul.f32 %v302, 1.442695
    %v309 = vpow.pop %v308
    %v310 = vmul.f32 %v303, 1.442695
    %v311 = vpow.pop %v310
    %v312 = vmul.f32 %v292, %v305
    %v313 = vmul.f32 %v293, %v307
    %v314 = vmul.f32 %v294, %v309
    %v315 = vmul.f32 %v295, %v311
    %v316 = vsub.f32 1.0, %v312
    %v317 = vsub.f32 1.0, %v313
    %v318 = vsub.f32 1.0, %v314
    %v319 = vsub.f32 1.0, %v315
    %v320 = vmul.f32 %v236, %v316
    %v321 = vmul.f32 %v237, %v317
    %v322 = vmul.f32 %v238, %v318
    %v323 = vmul.f32 %v239, %v319
    %v324 = vadd.f32 %v320, 1.0
    %v325 = vadd.f32 %v321, 1.0
    %v326 = vadd.f32 %v322, 1.0
    %v327 = vadd.f32 %v323, 1.0
    %v328 = vmul.f32 %v224, %v324
    %v329 = vmul.f32 %v225, %v325
    %v330 = vmul.f32 %v226, %v326
    %v331 = vmul.f32 %v227, %v327
    %v332 = vlaneseq
    %v333 = vshrl.u32 %v332, 7
    %v334 = vadd.s32 %v333, 8
    %v335 = vlaneseq
    %v336 = vand.u32 %v335, 127
    %v337 = vmul.u32 %v333, 2
    %v338 = vmul.u32 %v334, 2
    %vm339 = vcmp.eq.s32.totalorder %v336, %v337
    %vm340 = vcmp.eq.s32.totalorder %v336, %v338
    %v341 = vsel %vm339, 1.0, 0.0
    %v342 = vsel %vm340, 1.0, 0.0
    %v343 = vadd.s32 %v337, 1
    %v344 = vadd.s32 %v338, 1
    %vm345 = vcmp.eq.s32.totalorder %v336, %v343
    %vm346 = vcmp.eq.s32.totalorder %v336, %v344
    %v347 = vsel %vm345, 1.0, 0.0
    %v348 = vsel %vm346, 1.0, 0.0
    %vm349 = vcmask 261120
    %v351 = vsel %vm349, %v341, 0
    %v354 = vsel %vm349, %v342, 0
    %356 = vmatprep.subr.mxu0 0.0
    %357 = vmatpush1.msra.mxu0 0.0
    %358 = vmatprep.subr.mxu0 0.0
    %359 = vmatpush1.msra.mxu0 0.0
    %360 = vmatprep.subr.mxu0 0.0
    %361 = vmatpush1.msra.mxu0 0.0
    %362 = vmatprep.subr.mxu0 0.0
    %363 = vmatpush1.msra.mxu0 0.0
    %364 = vmatprep.subr.mxu0 0.0
    %365 = vmatpush1.msra.mxu0 0.0
    %366 = vmatprep.subr.mxu0 0.0
    %367 = vmatpush1.msra.mxu0 0.0
    %368 = vmatprep.subr.mxu0 0.0
    %369 = vmatpush1.msra.mxu0 0.0
    %370 = vmatprep.subr.mxu0 0.0
    %371 = vmatpush1.msra.mxu0 0.0
    %372 = vmatprep.subr.mxu0 0.0
    %373 = vmatpush1.msra.mxu0 0.0
    %374 = vmatprep.subr.mxu0 0.0
    %375 = vmatpush1.msra.mxu0 0.0
    %376 = vmatprep.subr.mxu0 0.0
    %377 = vmatpush1.msra.mxu0 0.0
    %378 = vmatprep.subr.mxu0 0.0
    %379 = vmatpush1.msra.mxu0 0.0
    %380 = vmatprep.subr.mxu0 0.0
    %381 = vmatpush1.msra.mxu0 %v331
    %382 = vmatprep.subr.mxu0 0.0
    %383 = vmatpush1.msra.mxu0 %v330
    %384 = vmatprep.subr.mxu0 0.0
    %385 = vmatpush1.msra.mxu0 %v329
    %386 = vmatprep.subr.mxu0 0.0
    %387 = vmatpush1.msra.mxu0 %v328
    %388 = vmatprep.subr.mxu0 0.0
    %389 = vmatpush2.msra.mxu0 0.0
    %390 = vmatprep.subr.mxu0 0.0
    %391 = vmatpush2.msra.mxu0 0.0
    %392 = vmatprep.subr.mxu0 0.0
    %393 = vmatpush2.msra.mxu0 0.0
    %394 = vmatprep.subr.mxu0 0.0
    %395 = vmatpush2.msra.mxu0 0.0
    %396 = vmatprep.subr.mxu0 0.0
    %397 = vmatpush2.msra.mxu0 0.0
    %398 = vmatprep.subr.mxu0 0.0
    %399 = vmatpush2.msra.mxu0 0.0
    %400 = vmatprep.subr.mxu0 0.0
    %401 = vmatpush2.msra.mxu0 0.0
    %402 = vmatprep.subr.mxu0 0.0
    %403 = vmatpush2.msra.mxu0 0.0
    %404 = vmatprep.subr.mxu0 0.0
    %405 = vmatpush2.msra.mxu0 0.0
    %406 = vmatprep.subr.mxu0 0.0
    %407 = vmatpush2.msra.mxu0 0.0
    %408 = vmatprep.subr.mxu0 0.0
    %409 = vmatpush2.msra.mxu0 0.0
    %410 = vmatprep.subr.mxu0 0.0
    %411 = vmatpush2.msra.mxu0 0.0
    %412 = vmatprep.subr.mxu0 0.0
    %413 = vmatpush2.msra.mxu0 0.0
    %414 = vmatprep.subr.mxu0 0.0
    %415 = vmatpush2.msra.mxu0 0.0
    %416 = vmatprep.subr.mxu0 0.0
    %417 = vmatpush2.msra.mxu0 0.0
    %418 = vmatprep.subr.mxu0 0.0
    %419 = vmatpush2.msra.mxu0 0.0
    %420 = vmatprep.mubr.f32.mxu0 0.0
    %421 = vmatmul.mubr.f32.gmra.mxu0 %v351
    %v422 = vpop.f32.mrf.mxu0
    %v423 = vadd.f32 0.0, %v422
    %v424 = vpop.f32.mrf.mxu0
    %425 = vmatprep.mubr.f32.mxu0 0.0
    %426 = vmatmul.mubr.f32.gmra.mxu0 %v354
    %v427 = vpop.f32.mrf.mxu0
    %v428 = vadd.f32 0.0, %v427
    %v429 = vpop.f32.mrf.mxu0
    %430 = vdwg.mxu0
    %v432 = vsel %vm349, %v347, 0
    %v435 = vsel %vm349, %v348, 0
    %437 = vmatprep.subr.mxu0 0.0
    %438 = vmatpush1.msra.mxu0 0.0
    %439 = vmatprep.subr.mxu0 0.0
    %440 = vmatpush1.msra.mxu0 0.0
    %441 = vmatprep.subr.mxu0 0.0
    %442 = vmatpush1.msra.mxu0 0.0
    %443 = vmatprep.subr.mxu0 0.0
    %444 = vmatpush1.msra.mxu0 0.0
    %445 = vmatprep.subr.mxu0 0.0
    %446 = vmatpush1.msra.mxu0 0.0
    %447 = vmatprep.subr.mxu0 0.0
    %448 = vmatpush1.msra.mxu0 0.0
    %449 = vmatprep.subr.mxu0 0.0
    %450 = vmatpush1.msra.mxu0 0.0
    %451 = vmatprep.subr.mxu0 0.0
    %452 = vmatpush1.msra.mxu0 0.0
    %453 = vmatprep.subr.mxu0 0.0
    %454 = vmatpush1.msra.mxu0 0.0
    %455 = vmatprep.subr.mxu0 0.0
    %456 = vmatpush1.msra.mxu0 0.0
    %457 = vmatprep.subr.mxu0 0.0
    %458 = vmatpush1.msra.mxu0 0.0
    %459 = vmatprep.subr.mxu0 0.0
    %460 = vmatpush1.msra.mxu0 0.0
    %461 = vmatprep.subr.mxu0 0.0
    %462 = vmatpush1.msra.mxu0 %v331
    %463 = vmatprep.subr.mxu0 0.0
    %464 = vmatpush1.msra.mxu0 %v330
    %465 = vmatprep.subr.mxu0 0.0
    %466 = vmatpush1.msra.mxu0 %v329
    %467 = vmatprep.subr.mxu0 0.0
    %468 = vmatpush1.msra.mxu0 %v328
    %469 = vmatprep.subr.mxu0 0.0
    %470 = vmatpush2.msra.mxu0 0.0
    %471 = vmatprep.subr.mxu0 0.0
    %472 = vmatpush2.msra.mxu0 0.0
    %473 = vmatprep.subr.mxu0 0.0
    %474 = vmatpush2.msra.mxu0 0.0
    %475 = vmatprep.subr.mxu0 0.0
    %476 = vmatpush2.msra.mxu0 0.0
    %477 = vmatprep.subr.mxu0 0.0
    %478 = vmatpush2.msra.mxu0 0.0
    %479 = vmatprep.subr.mxu0 0.0
    %480 = vmatpush2.msra.mxu0 0.0
    %481 = vmatprep.subr.mxu0 0.0
    %482 = vmatpush2.msra.mxu0 0.0
    %483 = vmatprep.subr.mxu0 0.0
    %484 = vmatpush2.msra.mxu0 0.0
    %485 = vmatprep.subr.mxu0 0.0
    %486 = vmatpush2.msra.mxu0 0.0
    %487 = vmatprep.subr.mxu0 0.0
    %488 = vmatpush2.msra.mxu0 0.0
    %489 = vmatprep.subr.mxu0 0.0
    %490 = vmatpush2.msra.mxu0 0.0
    %491 = vmatprep.subr.mxu0 0.0
    %492 = vmatpush2.msra.mxu0 0.0
    %493 = vmatprep.subr.mxu0 0.0
    %494 = vmatpush2.msra.mxu0 0.0
    %495 = vmatprep.subr.mxu0 0.0
    %496 = vmatpush2.msra.mxu0 0.0
    %497 = vmatprep.subr.mxu0 0.0
    %498 = vmatpush2.msra.mxu0 0.0
    %499 = vmatprep.subr.mxu0 0.0
    %500 = vmatpush2.msra.mxu0 0.0
    %501 = vmatprep.mubr.f32.mxu0 0.0
    %502 = vmatmul.mubr.f32.gmra.mxu0 %v432
    %v503 = vpop.f32.mrf.mxu0
    %v504 = vadd.f32 0.0, %v503
    %v505 = vpop.f32.mrf.mxu0
    %506 = vmatprep.mubr.f32.mxu0 0.0
    %507 = vmatmul.mubr.f32.gmra.mxu0 %v435
    %v508 = vpop.f32.mrf.mxu0
    %v509 = vadd.f32 0.0, %v508
    %v510 = vpop.f32.mrf.mxu0
    %511 = vdwg.mxu0
    %v512 = vld [vmem:[#allocation5 + $0x40] sm:$0xff]
    %v513 = vld [vmem:[#allocation5 + $0x48] sm:$0xff]
    %v514 = vld [vmem:[#allocation5 + $0x50] sm:$0xff]
    %v515 = vld [vmem:[#allocation5 + $0x58] sm:$0xff]
    %v516 = vld [vmem:[#allocation5 + $0x60] sm:$0xff]
    %v517 = vld [vmem:[#allocation5 + $0x68] sm:$0xff]
    %v518 = vld [vmem:[#allocation5 + $0x70] sm:$0xff]
    %v519 = vld [vmem:[#allocation5 + $0x78] sm:$0xff]
    %v520 = vld [vmem:[#allocation5 + $0x80] sm:$0xff]
    %v521 = vld [vmem:[#allocation5 + $0x88] sm:$0xff]
    %v522 = vld [vmem:[#allocation5 + $0x90] sm:$0xff]
    %v523 = vld [vmem:[#allocation5 + $0x98] sm:$0xff]
    %v524 = vld [vmem:[#allocation5 + $0xa0] sm:$0xff]
    %v525 = vld [vmem:[#allocation5 + $0xa8] sm:$0xff]
    %v526 = vld [vmem:[#allocation5 + $0xb0] sm:$0xff]
    %v527 = vld [vmem:[#allocation5 + $0xb8] sm:$0xff]
    %v528 = vld [vmem:[#allocation5 + $0xc0] sm:$0xff]
    %v529 = vld [vmem:[#allocation5 + $0xc8] sm:$0xff]
    %v530 = vld [vmem:[#allocation5 + $0xd0] sm:$0xff]
    %v531 = vld [vmem:[#allocation5 + $0xd8] sm:$0xff]
    %v532 = vld [vmem:[#allocation5 + $0xe0] sm:$0xff]
    %v533 = vld [vmem:[#allocation5 + $0xe8] sm:$0xff]
    %v534 = vld [vmem:[#allocation5 + $0xf0] sm:$0xff]
    %v535 = vld [vmem:[#allocation5 + $0xf8] sm:$0xff]
    %v536 = vld [vmem:[#allocation5 + $0x100] sm:$0xff]
    %v537 = vld [vmem:[#allocation5 + $0x108] sm:$0xff]
    %v538 = vld [vmem:[#allocation5 + $0x110] sm:$0xff]
    %v539 = vld [vmem:[#allocation5 + $0x118] sm:$0xff]
    %v540 = vld [vmem:[#allocation5 + $0x120] sm:$0xff]
    %v541 = vld [vmem:[#allocation5 + $0x128] sm:$0xff]
    %v542 = vld [vmem:[#allocation5 + $0x130] sm:$0xff]
    %v543 = vld [vmem:[#allocation5 + $0x138] sm:$0xff]
    %v544 = vld [vmem:[%s2 + $0x2] sm:$0x1]
    %545 = vmatprep.subr.mxu0 0.0
    %546 = vmatpush1.msra.mxu0 %v543
    %547 = vmatprep.subr.mxu0 0.0
    %548 = vmatpush1.msra.mxu0 %v542
    %549 = vmatprep.subr.mxu0 0.0
    %550 = vmatpush1.msra.mxu0 %v541
    %551 = vmatprep.subr.mxu0 0.0
    %552 = vmatpush1.msra.mxu0 %v540
    %553 = vmatprep.subr.mxu0 0.0
    %554 = vmatpush1.msra.mxu0 %v539
    %555 = vmatprep.subr.mxu0 0.0
    %556 = vmatpush1.msra.mxu0 %v538
    %557 = vmatprep.subr.mxu0 0.0
    %558 = vmatpush1.msra.mxu0 %v537
    %559 = vmatprep.subr.mxu0 0.0
    %560 = vmatpush1.msra.mxu0 %v536
    %561 = vmatprep.subr.mxu0 0.0
    %562 = vmatpush1.msra.mxu0 %v535
    %563 = vmatprep.subr.mxu0 0.0
    %564 = vmatpush1.msra.mxu0 %v534
    %565 = vmatprep.subr.mxu0 0.0
    %566 = vmatpush1.msra.mxu0 %v533
    %567 = vmatprep.subr.mxu0 0.0
    %568 = vmatpush1.msra.mxu0 %v532
    %569 = vmatprep.subr.mxu0 0.0
    %570 = vmatpush1.msra.mxu0 %v531
    %571 = vmatprep.subr.mxu0 0.0
    %572 = vmatpush1.msra.mxu0 %v530
    %573 = vmatprep.subr.mxu0 0.0
    %574 = vmatpush1.msra.mxu0 %v529
    %575 = vmatprep.subr.mxu0 0.0
    %576 = vmatpush1.msra.mxu0 %v528
    %577 = vmatprep.subr.mxu0 0.0
    %578 = vmatpush2.msra.mxu0 0.0
    %579 = vmatprep.subr.mxu0 0.0
    %580 = vmatpush2.msra.mxu0 0.0
    %581 = vmatprep.subr.mxu0 0.0
    %582 = vmatpush2.msra.mxu0 0.0
    %583 = vmatprep.subr.mxu0 0.0
    %584 = vmatpush2.msra.mxu0 0.0
    %585 = vmatprep.subr.mxu0 0.0
    %586 = vmatpush2.msra.mxu0 0.0
    %587 = vmatprep.subr.mxu0 0.0
    %588 = vmatpush2.msra.mxu0 0.0
    %589 = vmatprep.subr.mxu0 0.0
    %590 = vmatpush2.msra.mxu0 0.0
    %591 = vmatprep.subr.mxu0 0.0
    %592 = vmatpush2.msra.mxu0 0.0
    %593 = vmatprep.subr.mxu0 0.0
    %594 = vmatpush2.msra.mxu0 0.0
    %595 = vmatprep.subr.mxu0 0.0
    %596 = vmatpush2.msra.mxu0 0.0
    %597 = vmatprep.subr.mxu0 0.0
    %598 = vmatpush2.msra.mxu0 0.0
    %599 = vmatprep.subr.mxu0 0.0
    %600 = vmatpush2.msra.mxu0 0.0
    %601 = vmatprep.subr.mxu0 0.0
    %602 = vmatpush2.msra.mxu0 0.0
    %603 = vmatprep.subr.mxu0 0.0
    %604 = vmatpush2.msra.mxu0 0.0
    %605 = vmatprep.subr.mxu0 0.0
    %606 = vmatpush2.msra.mxu0 0.0
    %607 = vmatprep.subr.mxu0 0.0
    %608 = vmatpush2.msra.mxu0 0.0
    %609 = vmatprep.mubr.f32.mxu0 0.0
    %610 = vmatmul.mubr.f32.gmra.mxu0 %v504
    %v611 = vpop.f32.mrf.mxu0
    %v612 = vadd.f32 0.0, %v611
    %v613 = vpop.f32.mrf.mxu0
    %614 = vmatprep.mubr.f32.mxu0 0.0
    %615 = vmatmul.mubr.f32.gmra.mxu0 %v509
    %v616 = vpop.f32.mrf.mxu0
    %v617 = vadd.f32 0.0, %v616
    %v618 = vpop.f32.mrf.mxu0
    %619 = vdwg.mxu0
    %620 = vmatprep.subr.mxu0 0.0
    %621 = vmatpush1.msra.mxu0 %v527
    %622 = vmatprep.subr.mxu0 0.0
    %623 = vmatpush1.msra.mxu0 %v526
    %624 = vmatprep.subr.mxu0 0.0
    %625 = vmatpush1.msra.mxu0 %v525
    %626 = vmatprep.subr.mxu0 0.0
    %627 = vmatpush1.msra.mxu0 %v524
    %628 = vmatprep.subr.mxu0 0.0
    %629 = vmatpush1.msra.mxu0 %v523
    %630 = vmatprep.subr.mxu0 0.0
    %631 = vmatpush1.msra.mxu0 %v522
    %632 = vmatprep.subr.mxu0 0.0
    %633 = vmatpush1.msra.mxu0 %v521
    %634 = vmatprep.subr.mxu0 0.0
    %635 = vmatpush1.msra.mxu0 %v520
    %636 = vmatprep.subr.mxu0 0.0
    %637 = vmatpush1.msra.mxu0 %v519
    %638 = vmatprep.subr.mxu0 0.0
    %639 = vmatpush1.msra.mxu0 %v518
    %640 = vmatprep.subr.mxu0 0.0
    %641 = vmatpush1.msra.mxu0 %v517
    %642 = vmatprep.subr.mxu0 0.0
    %643 = vmatpush1.msra.mxu0 %v516
    %644 = vmatprep.subr.mxu0 0.0
    %645 = vmatpush1.msra.mxu0 %v515
    %646 = vmatprep.subr.mxu0 0.0
    %647 = vmatpush1.msra.mxu0 %v514
    %648 = vmatprep.subr.mxu0 0.0
    %649 = vmatpush1.msra.mxu0 %v513
    %650 = vmatprep.subr.mxu0 0.0
    %651 = vmatpush1.msra.mxu0 %v512
    %652 = vmatprep.subr.mxu0 0.0
    %653 = vmatpush2.msra.mxu0 0.0
    %654 = vmatprep.subr.mxu0 0.0
    %655 = vmatpush2.msra.mxu0 0.0
    %656 = vmatprep.subr.mxu0 0.0
    %657 = vmatpush2.msra.mxu0 0.0
    %658 = vmatprep.subr.mxu0 0.0
    %659 = vmatpush2.msra.mxu0 0.0
    %660 = vmatprep.subr.mxu0 0.0
    %661 = vmatpush2.msra.mxu0 0.0
    %662 = vmatprep.subr.mxu0 0.0
    %663 = vmatpush2.msra.mxu0 0.0
    %664 = vmatprep.subr.mxu0 0.0
    %665 = vmatpush2.msra.mxu0 0.0
    %666 = vmatprep.subr.mxu0 0.0
    %667 = vmatpush2.msra.mxu0 0.0
    %668 = vmatprep.subr.mxu0 0.0
    %669 = vmatpush2.msra.mxu0 0.0
    %670 = vmatprep.subr.mxu0 0.0
    %671 = vmatpush2.msra.mxu0 0.0
    %672 = vmatprep.subr.mxu0 0.0
    %673 = vmatpush2.msra.mxu0 0.0
    %674 = vmatprep.subr.mxu0 0.0
    %675 = vmatpush2.msra.mxu0 0.0
    %676 = vmatprep.subr.mxu0 0.0
    %677 = vmatpush2.msra.mxu0 0.0
    %678 = vmatprep.subr.mxu0 0.0
    %679 = vmatpush2.msra.mxu0 0.0
    %680 = vmatprep.subr.mxu0 0.0
    %681 = vmatpush2.msra.mxu0 0.0
    %682 = vmatprep.subr.mxu0 0.0
    %683 = vmatpush2.msra.mxu0 0.0
    %684 = vmatprep.mubr.f32.mxu0 0.0
    %685 = vmatmul.mubr.f32.gmra.mxu0 %v423
    %v686 = vpop.f32.mrf.mxu0
    %v687 = vadd.f32 %v612, %v686
    %v688 = vpop.f32.mrf.mxu0
    %689 = vmatprep.mubr.f32.mxu0 0.0
    %690 = vmatmul.mubr.f32.gmra.mxu0 %v428
    %v691 = vpop.f32.mrf.mxu0
    %v692 = vadd.f32 %v617, %v691
    %v693 = vpop.f32.mrf.mxu0
    %694 = vdwg.mxu0
    %v695 = vlaneseq
    %v696 = vshrl.u32 %v695, 7
    %v697 = vsub.s32 0, %v696
    %v698 = vrot.slane %v544, %v697
    %v699 = vadd.f32 %v687, %v698
    %v700 = vadd.f32 %v692, %v698
    %701 = vst [vmem:[#allocation7] sm:$0xff] %v699
    %702 = vst [vmem:[#allocation7 + $0x8] sm:$0xff] %v700
    // Predicated region
    $region22: #{downsample_forward.1} parent=1 // pred_check
      _
    $region23: #{downsample_forward.1} parent=1 // pred_check_branch
      %704 = sbr.rel (0) target = $region25
    $region24: #{downsample_forward.1} parent=1 // pred_region
      %s706 = ssub.s32 256, 256
      %707 = vsyncadd [#allocation4], %s706
      %s708 = sshll.u32 [#allocation7], 4
      %s709 = int_to_ptr.vmem [resolvable:$true] %s708
      %714 = dma.vmem_to_hbm [thread:$0]  %s709, 256, %s3, [#allocation4], 128, 128, 8
    $region25: #{downsample_forward.1} parent=1 // pred_fallthru
      _
    // Predicated region
    $region26: #{downsample_forward.1} parent=1 // pred_check
      _
    $region27: #{downsample_forward.1} parent=1 // pred_check_branch
      %716 = sbr.rel (0) target = $region29
    $region28: #{downsample_forward.1} parent=1 // pred_region
      %717 = dma.done [#allocation4], 256
    $region29: #{downsample_forward.1} parent=1 // pred_fallthru
      _
    %718 = vsyncpa [#allocation3], 1
    %719 = vsyncpa [#allocation6], 1
    %720 = vsyncpa [#allocation4], 1

</llo_original>
